<compile_context>
chip_gen: v5e
topology: v5e:2x2
jax: 0.10.0
libtpu: 0.0.40
codegen_flags: <defaults>
</compile_context>

<pallas_src>
import jax
import jax.numpy as jnp
from jax.experimental import pallas as pl
from jax.experimental.pallas import tpu as pltpu


# ----------------------------- Pallas kernel --------------------------------
def _critic_kernel(x_ref, w0_ref, b0_ref, w1_ref, b1_ref, w2_ref, b2_ref, q_ref):
    # layer 0: fused [obs|goal|act] rows x [f_hid | phi_hid] cols (single MXU pass)
    h = jnp.dot(x_ref[...], w0_ref[...],
                preferred_element_type=jnp.float32) + b0_ref[...]
    h = jnp.maximum(h, 0.0)

    # layer 1: block-diagonal [fw1, pw1]
    h = jnp.dot(h.astype(jnp.bfloat16), w1_ref[...],
                preferred_element_type=jnp.float32) + b1_ref[...]
    h = jnp.maximum(h, 0.0)

    # layer 2 with the f - phi subtraction folded into the weights:
    #   diff = h_f @ fw2 - h_phi @ pw2 + (fb2 - pb2)          (tb, E)
    diff = jnp.dot(h.astype(jnp.bfloat16), w2_ref[...],
                   preferred_element_type=jnp.float32) + b2_ref[...]

    # q = -||diff||_2, stored lane-dense.  Transpose the (tb, E) tile (XLU has
    # slack here) so the sum-of-squares is a sublane reduce straight to (1, tb).
    d2 = (diff * diff).T                                   # (E, tb)
    q_ref[...] = -jnp.sqrt(jnp.sum(d2, axis=0, keepdims=True))   # (1, tb)


# ------------------------- host-side weight packing ---------------------------
def _block_diag(a, b):
    za = jnp.zeros((a.shape[0], b.shape[1]), a.dtype)
    zb = jnp.zeros((b.shape[0], a.shape[1]), b.dtype)
    return jnp.concatenate(
        [jnp.concatenate([a, za], axis=1),
         jnp.concatenate([zb, b], axis=1)], axis=0)


def pack_critic_params(params, *, obs_dim, act_dim, goal_dim, act_limit,
                       mxu_dtype=jnp.bfloat16):
    """Fuse f / phi MLP weights into block-packed matrices (once, host-side)."""
    fw0, fb0, fw1, fb1, fw2, fb2 = params["f"]
    pw0, pb0, pw1, pb1, pw2, pb2 = params["phi"]
    hid = fw1.shape[0]

    fw0_obs, fw0_act = fw0[:obs_dim], fw0[obs_dim:]
    pw0_obs, pw0_goal = pw0[:obs_dim], pw0[obs_dim:]

    zg = jnp.zeros((goal_dim, hid), fw0.dtype)
    za = jnp.zeros((act_dim, hid), fw0.dtype)
    # rows over [obs | goal | act], cols over [f_hid | phi_hid];
    # 1/act_limit folded into the action rows.
    w0 = jnp.concatenate(
        [jnp.concatenate([fw0_obs, pw0_obs], axis=1),
         jnp.concatenate([zg, pw0_goal], axis=1),
         jnp.concatenate([fw0_act / act_limit, za], axis=1)], axis=0)  # (pi+act, 2H)
    b0 = jnp.concatenate([fb0, pb0]).reshape(1, -1)

    w1 = _block_diag(fw1, pw1)                                         # (2H, 2H)
    b1 = jnp.concatenate([fb1, pb1]).reshape(1, -1)

    # fold f - phi subtraction into layer 2: diff = h @ [fw2; -pw2] + (fb2 - pb2)
    w2 = jnp.concatenate([fw2, -pw2], axis=0)                          # (2H, E)
    b2 = (fb2 - pb2).reshape(1, -1)

    return (w0.astype(mxu_dtype), b0.astype(jnp.float32),
            w1.astype(mxu_dtype), b1.astype(jnp.float32),
            w2.astype(mxu_dtype), b2.astype(jnp.float32))


# ------------------------------ wrapper --------------------------------------
def _round_up(x, m):
    return ((x + m - 1) // m) * m


def state_asym_metric_critic(pi_inputs, actions, packed, *, block_rows=2048):
    """pi_inputs: (B, obs+goal); actions: (B, act). Returns q of shape (B,)."""
    B = pi_inputs.shape[0]
    w0, b0, w1, b1, w2, b2 = packed
    k_dim = w0.shape[0]
    assert pi_inputs.shape[1] + actions.shape[1] == k_dim

    # Single fused activation (bf16 halves the HBM read of the batch tiles).
    x = jnp.concatenate([pi_inputs, actions], axis=-1).astype(jnp.bfloat16)

    # Row tile: whole batch when small; otherwise a 128-multiple sized so the
    # parallel batch grid has >=4 steps (keeps both v7x TensorCores busy) while
    # staying under block_rows (VMEM stays well below v5e's 16 MiB scoped
    # default even double-buffered -- kernel is per-step-overhead bound).
    if B <= 256:
        tb = B
    else:
        tb = min(block_rows, max(128, _round_up(pl.cdiv(B, 4), 128)))
    n_tiles = pl.cdiv(B, tb)

    row = lambda i: (i, 0)   # activations tiled over rows
    rep = lambda i: (0, 0)   # weights/biases resident across all grid steps

    in_specs = [
        pl.BlockSpec((tb, k_dim), row),
        pl.BlockSpec(w0.shape, rep),
        pl.BlockSpec(b0.shape, rep),
        pl.BlockSpec(w1.shape, rep),
        pl.BlockSpec(b1.shape, rep),
        pl.BlockSpec(w2.shape, rep),
        pl.BlockSpec(b2.shape, rep),
    ]

    # Lane-dense output: one (1, tb) row per grid step.
    q2d = pl.pallas_call(
        _critic_kernel,
        out_shape=jax.ShapeDtypeStruct((n_tiles, tb), jnp.float32),
        grid=(n_tiles,),
        in_specs=in_specs,
        out_specs=pl.BlockSpec((1, tb), lambda i: (i, 0)),
        compiler_params=pltpu.CompilerParams(
            dimension_semantics=("parallel",),        # v7x megacore sharding
            vmem_limit_bytes=32 * 1024 * 1024,        # covers v5e's 16 MiB default
        ),
    )(x, w0, b0, w1, b1, w2, b2)

    return q2d.reshape(-1)[:B]   # matches .squeeze() in the torch code


# --------------------------- pure-JAX reference -------------------------------
def _reference(pi_inputs, actions, params, *, obs_dim, act_limit):
    obses = pi_inputs[:, :obs_dim]
    goals = pi_inputs[:, obs_dim:]

    def mlp(x, ws):
        w0, b0, w1, b1, w2, b2 = ws
        h = jnp.maximum(x @ w0 + b0, 0.0)
        h = jnp.maximum(h @ w1 + b1, 0.0)
        return h @ w2 + b2

    f_e = mlp(jnp.concatenate([obses, actions / act_limit], axis=-1), params["f"])
    p_e = mlp(jnp.concatenate([obses, goals], axis=-1), params["phi"])
    return -jnp.linalg.norm(f_e - p_e, axis=-1)


# --------------------------------- main ---------------------------------------
if __name__ == "__main__":
    # small synthetic env / args (fourier_features=None -> LFF branch unused)
    OBS, ACT, GOAL = 16, 8, 8
    HID, EMBED = 32, 16
    ACT_LIMIT = 2.0
    B = 8

    key = jax.random.PRNGKey(0)
    keys = jax.random.split(key, 16)

    def linear(kw, kb, d_in, d_out):
        w = jax.random.normal(kw, (d_in, d_out), jnp.float32) / jnp.sqrt(d_in)
        b = 0.01 * jax.random.normal(kb, (d_out,), jnp.float32)
        return w, b

    fw0, fb0 = linear(keys[0], keys[1], OBS + ACT, HID)
    fw1, fb1 = linear(keys[2], keys[3], HID, HID)
    fw2, fb2 = linear(keys[4], keys[5], HID, EMBED)
    pw0, pb0 = linear(keys[6], keys[7], OBS + GOAL, HID)
    pw1, pb1 = linear(keys[8], keys[9], HID, HID)
    pw2, pb2 = linear(keys[10], keys[11], HID, EMBED)
    params = {"f": (fw0, fb0, fw1, fb1, fw2, fb2),
              "phi": (pw0, pb0, pw1, pb1, pw2, pb2)}

    pi_inputs = jax.random.normal(keys[12], (B, OBS + GOAL), jnp.float32)
    actions = ACT_LIMIT * jax.random.uniform(
        keys[13], (B, ACT), jnp.float32, minval=-1.0, maxval=1.0)

    # one-time host-side packing (branch fusion, act_limit fold, f-phi fold, bf16)
    packed = pack_critic_params(params, obs_dim=OBS, act_dim=ACT,
                                goal_dim=GOAL, act_limit=ACT_LIMIT)

    q = state_asym_metric_critic(pi_inputs, actions, packed)
    q = jax.block_until_ready(q)

    q_ref = _reference(pi_inputs, actions, params, obs_dim=OBS, act_limit=ACT_LIMIT)
    assert q.shape == (B,)
    # bf16 MXU operands (f32 accumulation) -> loosened tolerance vs f32 reference.
    assert jnp.allclose(q, q_ref, atol=5e-2, rtol=5e-2), (q, q_ref)

    print("KERNEL_OK")
</pallas_src>

<mosaic_0001>
module attributes {stable_mosaic.version = 11 : i64} {
  func.func @_critic_kernel(%arg0: i32, %arg1: memref<8x32xbf16, #tpu.memory_space<vmem>>, %arg2: memref<32x64xbf16, #tpu.memory_space<vmem>>, %arg3: memref<1x64xf32, #tpu.memory_space<vmem>>, %arg4: memref<64x64xbf16, #tpu.memory_space<vmem>>, %arg5: memref<1x64xf32, #tpu.memory_space<vmem>>, %arg6: memref<64x16xbf16, #tpu.memory_space<vmem>>, %arg7: memref<1x16xf32, #tpu.memory_space<vmem>>, %arg8: memref<1x8xf32, #tpu.memory_space<vmem>>) attributes {dimension_semantics = [#tpu.dimension_semantics<parallel>], iteration_bounds = array<i64: 1>, scalar_prefetch = 0 : i64, scratch_operands = 0 : i64, tpu.core_type = #tpu.core_type<tc>, window_params = [{transform_indices = @transform_0, window_bounds = array<i64: 8, 32>}, {pipeline_mode = #tpu.pipeline_mode<synchronous>, transform_indices = @transform_1, window_bounds = array<i64: 32, 64>}, {pipeline_mode = #tpu.pipeline_mode<synchronous>, transform_indices = @transform_2, window_bounds = array<i64: 1, 64>}, {pipeline_mode = #tpu.pipeline_mode<synchronous>, transform_indices = @transform_3, window_bounds = array<i64: 64, 64>}, {pipeline_mode = #tpu.pipeline_mode<synchronous>, transform_indices = @transform_4, window_bounds = array<i64: 1, 64>}, {pipeline_mode = #tpu.pipeline_mode<synchronous>, transform_indices = @transform_5, window_bounds = array<i64: 64, 16>}, {pipeline_mode = #tpu.pipeline_mode<synchronous>, transform_indices = @transform_6, window_bounds = array<i64: 1, 16>}, {transform_indices = @transform_7, window_bounds = array<i64: 1, 8>}]} {
    %c0 = arith.constant 0 : index
    %c0_0 = arith.constant 0 : index
    %0 = vector.load %arg1[%c0, %c0_0] : memref<8x32xbf16, #tpu.memory_space<vmem>>, vector<8x32xbf16>
    %c0_1 = arith.constant 0 : index
    %c0_2 = arith.constant 0 : index
    %1 = vector.load %arg2[%c0_1, %c0_2] : memref<32x64xbf16, #tpu.memory_space<vmem>>, vector<32x64xbf16>
    %cst = arith.constant dense<0.000000e+00> : vector<8x64xf32>
    %2 = tpu.matmul %0, %1, %cst {dimension_numbers = #tpu.dot_dimension_numbers<[1], [0], [0], [1], [0, 0, 1, 1], [], []>} : vector<8x32xbf16>, vector<32x64xbf16>, vector<8x64xf32> -> vector<8x64xf32>
    %c0_3 = arith.constant 0 : index
    %c0_4 = arith.constant 0 : index
    %3 = vector.load %arg3[%c0_3, %c0_4] : memref<1x64xf32, #tpu.memory_space<vmem>>, vector<1x64xf32>
    %4 = vector.broadcast %3 : vector<1x64xf32> to vector<8x64xf32>
    %5 = arith.addf %2, %4 : vector<8x64xf32>
    %cst_5 = arith.constant 0.000000e+00 : f32
    %6 = vector.broadcast %cst_5 : f32 to vector<8x64xf32>
    %7 = arith.maximumf %5, %6 : vector<8x64xf32>
    %8 = arith.truncf %7 : vector<8x64xf32> to vector<8x64xbf16>
    %c0_6 = arith.constant 0 : index
    %c0_7 = arith.constant 0 : index
    %9 = vector.load %arg4[%c0_6, %c0_7] : memref<64x64xbf16, #tpu.memory_space<vmem>>, vector<64x64xbf16>
    %cst_8 = arith.constant dense<0.000000e+00> : vector<8x64xf32>
    %10 = tpu.matmul %8, %9, %cst_8 {dimension_numbers = #tpu.dot_dimension_numbers<[1], [0], [0], [1], [0, 0, 1, 1], [], []>} : vector<8x64xbf16>, vector<64x64xbf16>, vector<8x64xf32> -> vector<8x64xf32>
    %c0_9 = arith.constant 0 : index
    %c0_10 = arith.constant 0 : index
    %11 = vector.load %arg5[%c0_9, %c0_10] : memref<1x64xf32, #tpu.memory_space<vmem>>, vector<1x64xf32>
    %12 = vector.broadcast %11 : vector<1x64xf32> to vector<8x64xf32>
    %13 = arith.addf %10, %12 : vector<8x64xf32>
    %cst_11 = arith.constant 0.000000e+00 : f32
    %14 = vector.broadcast %cst_11 : f32 to vector<8x64xf32>
    %15 = arith.maximumf %13, %14 : vector<8x64xf32>
    %16 = arith.truncf %15 : vector<8x64xf32> to vector<8x64xbf16>
    %c0_12 = arith.constant 0 : index
    %c0_13 = arith.constant 0 : index
    %17 = vector.load %arg6[%c0_12, %c0_13] : memref<64x16xbf16, #tpu.memory_space<vmem>>, vector<64x16xbf16>
    %cst_14 = arith.constant dense<0.000000e+00> : vector<8x16xf32>
    %18 = tpu.matmul %16, %17, %cst_14 {dimension_numbers = #tpu.dot_dimension_numbers<[1], [0], [0], [1], [0, 0, 1, 1], [], []>} : vector<8x64xbf16>, vector<64x16xbf16>, vector<8x16xf32> -> vector<8x16xf32>
    %c0_15 = arith.constant 0 : index
    %c0_16 = arith.constant 0 : index
    %19 = vector.load %arg7[%c0_15, %c0_16] : memref<1x16xf32, #tpu.memory_space<vmem>>, vector<1x16xf32>
    %20 = vector.broadcast %19 : vector<1x16xf32> to vector<8x16xf32>
    %21 = arith.addf %18, %20 : vector<8x16xf32>
    %22 = arith.mulf %21, %21 : vector<8x16xf32>
    %23 = tpu.transpose %22, [1, 0] : vector<8x16xf32> -> vector<16x8xf32>
    %cst_17 = arith.constant dense<0.000000e+00> : vector<8xf32>
    %24 = vector.multi_reduction <add>, %23, %cst_17 [0] : vector<16x8xf32> to vector<8xf32>
    %25 = vector.shape_cast %24 : vector<8xf32> to vector<1x8xf32>
    %26 = math.sqrt %25 : vector<1x8xf32>
    %cst_18 = arith.constant 0.000000e+00 : f32
    %27 = vector.broadcast %cst_18 : f32 to vector<1x8xf32>
    %28 = arith.subf %27, %26 : vector<1x8xf32>
    %c0_19 = arith.constant 0 : index
    %c0_20 = arith.constant 0 : index
    %29 = vector.load %arg8[%c0_19, %c0_20] : memref<1x8xf32, #tpu.memory_space<vmem>>, vector<1x8xf32>
    tpu.vector_store %arg8[%c0_19, %c0_20], %28 {strides = array<i32>} : memref<1x8xf32, #tpu.memory_space<vmem>>, vector<1x8xf32>,
    return
  }
  func.func @transform_0(%arg0: i32) -> (i32, i32) {
    %c0_i32 = arith.constant 0 : i32
    %c0_i32_0 = arith.constant 0 : i32
    return %arg0, %c0_i32 : i32, i32
  }
  func.func @transform_1(%arg0: i32) -> (i32, i32) {
    %c0_i32 = arith.constant 0 : i32
    %c0_i32_0 = arith.constant 0 : i32
    %c0_i32_1 = arith.constant 0 : i32
    return %c0_i32, %c0_i32_0 : i32, i32
  }
  func.func @transform_2(%arg0: i32) -> (i32, i32) {
    %c0_i32 = arith.constant 0 : i32
    %c0_i32_0 = arith.constant 0 : i32
    %c0_i32_1 = arith.constant 0 : i32
    return %c0_i32, %c0_i32_0 : i32, i32
  }
  func.func @transform_3(%arg0: i32) -> (i32, i32) {
    %c0_i32 = arith.constant 0 : i32
    %c0_i32_0 = arith.constant 0 : i32
    %c0_i32_1 = arith.constant 0 : i32
    return %c0_i32, %c0_i32_0 : i32, i32
  }
  func.func @transform_4(%arg0: i32) -> (i32, i32) {
    %c0_i32 = arith.constant 0 : i32
    %c0_i32_0 = arith.constant 0 : i32
    %c0_i32_1 = arith.constant 0 : i32
    return %c0_i32, %c0_i32_0 : i32, i32
  }
  func.func @transform_5(%arg0: i32) -> (i32, i32) {
    %c0_i32 = arith.constant 0 : i32
    %c0_i32_0 = arith.constant 0 : i32
    %c0_i32_1 = arith.constant 0 : i32
    return %c0_i32, %c0_i32_0 : i32, i32
  }
  func.func @transform_6(%arg0: i32) -> (i32, i32) {
    %c0_i32 = arith.constant 0 : i32
    %c0_i32_0 = arith.constant 0 : i32
    %c0_i32_1 = arith.constant 0 : i32
    return %c0_i32, %c0_i32_0 : i32, i32
  }
  func.func @transform_7(%arg0: i32) -> (i32, i32) {
    %c0_i32 = arith.constant 0 : i32
    %c0_i32_0 = arith.constant 0 : i32
    return %arg0, %c0_i32 : i32, i32
  }
}

</mosaic_0001>

<llo_original>
// kernel: tpu_custom_call.1
$region0: #{tpu_custom_call.1}
  #allocation0 [shape = 'u32[]', space=smem, size = 0x4, offset = 0x4, fixed_abs, tag = 'smem constant byte address 0x4 - core index']
  #allocation1 [shape = 'u32[72,128]{1,0:T(1,128)}', space=vmem, size = 0x9000, scoped, tag = 'internal scratch']
  %s0 = inlined_call_operand.vmem [shape: bf16[8,32], index: 0, kind: input, shape index: {}]
  %s1 = inlined_call_operand.hbm [shape: bf16[32,64], index: 1, kind: input, shape index: {}]
  %s2 = inlined_call_operand.vmem [shape: f32[1,64], index: 2, kind: input, shape index: {}]
  %s3 = inlined_call_operand.vmem [shape: bf16[64,64], index: 3, kind: input, shape index: {}]
  %s4 = inlined_call_operand.vmem [shape: f32[1,64], index: 4, kind: input, shape index: {}]
  %s5 = inlined_call_operand.vmem [shape: bf16[64,16], index: 5, kind: input, shape index: {}]
  %s6 = inlined_call_operand.vmem [shape: f32[1,16], index: 6, kind: input, shape index: {}]
  %s7 = inlined_call_operand.hbm [shape: f32[1,8], index: 7, kind: output, shape index: {}]
  %s8 = sld [smem:[#allocation0]]
  $region42: #{tpu_custom_call.1} parent=0
    _
  %s10 = ssub.s32 1, %s8
  %s11 = scalar_select 0, %s10, %s8
  $region1: #{tpu_custom_call.1} parent=0
    #allocation2 [shape = 'u8[8192]{0}', space=vmem, size = 0x2000, scoped, tag = 'input window, operand 1, single buffered']
    #allocation3 [shape = 's32[1]{0}', space=sflag, size = 0x4, scoped, tag = 'scoped memory for tpu_custom_call.1']
    #allocation4 [shape = 's32[1]{0}', space=sflag, size = 0x4, scoped, tag = 'scoped memory for tpu_custom_call.1']
    #allocation5 [shape = 'u8[512]{0}', space=vmem, size = 0x400, scoped, tag = 'output window, operand 0, single buffered']
    %12 = vsyncpa [#allocation3], 0
    %13 = vsyncpa [#allocation4], 0
    // Predicated region
    $region2: #{tpu_custom_call.1} parent=1 // pred_check
      _
    $region3: #{tpu_custom_call.1} parent=1 // pred_check_branch
      %15 = sbr.rel (0) target = $region5
    $region4: #{tpu_custom_call.1} parent=1 // pred_region
      _
    $region5: #{tpu_custom_call.1} parent=1 // pred_fallthru
      _
    // Predicated region
    $region6: #{tpu_custom_call.1} parent=1 // pred_check
      _
    $region7: #{tpu_custom_call.1} parent=1 // pred_check_branch
      %17 = sbr.rel (0) target = $region9
    $region8: #{tpu_custom_call.1} parent=1 // pred_region
      %19 = vsyncadd [#allocation3], 0
      %s20 = sshll.u32 %s1, 4
      %s21 = int_to_ptr.hbm [resolvable:$true] %s20
      %s22 = sshll.u32 [#allocation2], 4
      %s23 = int_to_ptr.vmem [resolvable:$true] %s22
      %28 = dma.hbm_to_vmem [thread:$0]  %s21, 256, %s23, [#allocation3], 64, 64, 4
    $region9: #{tpu_custom_call.1} parent=1 // pred_fallthru
      _
    // Predicated region
    $region10: #{tpu_custom_call.1} parent=1 // pred_check
      _
    $region11: #{tpu_custom_call.1} parent=1 // pred_check_branch
      %30 = sbr.rel (0) target = $region13
    $region12: #{tpu_custom_call.1} parent=1 // pred_region
      _
    $region13: #{tpu_custom_call.1} parent=1 // pred_fallthru
      _
    // Predicated region
    $region14: #{tpu_custom_call.1} parent=1 // pred_check
      _
    $region15: #{tpu_custom_call.1} parent=1 // pred_check_branch
      %32 = sbr.rel (0) target = $region17
    $region16: #{tpu_custom_call.1} parent=1 // pred_region
      _
    $region17: #{tpu_custom_call.1} parent=1 // pred_fallthru
      _
    // Predicated region
    $region18: #{tpu_custom_call.1} parent=1 // pred_check
      _
    $region19: #{tpu_custom_call.1} parent=1 // pred_check_branch
      %34 = sbr.rel (0) target = $region21
    $region20: #{tpu_custom_call.1} parent=1 // pred_region
      _
    $region21: #{tpu_custom_call.1} parent=1 // pred_fallthru
      _
    // Predicated region
    $region22: #{tpu_custom_call.1} parent=1 // pred_check
      _
    $region23: #{tpu_custom_call.1} parent=1 // pred_check_branch
      %36 = sbr.rel (0) target = $region25
    $region24: #{tpu_custom_call.1} parent=1 // pred_region
      _
    $region25: #{tpu_custom_call.1} parent=1 // pred_fallthru
      _
    // Predicated region
    $region26: #{tpu_custom_call.1} parent=1 // pred_check
      _
    $region27: #{tpu_custom_call.1} parent=1 // pred_check_branch
      %38 = sbr.rel (0) target = $region29
    $region28: #{tpu_custom_call.1} parent=1 // pred_region
      _
    $region29: #{tpu_custom_call.1} parent=1 // pred_fallthru
      _
    // Predicated region
    $region30: #{tpu_custom_call.1} parent=1 // pred_check
      _
    $region31: #{tpu_custom_call.1} parent=1 // pred_check_branch
      %40 = sbr.rel (0) target = $region33
    $region32: #{tpu_custom_call.1} parent=1 // pred_region
      %42 = dma.done [#allocation3], 256
    $region33: #{tpu_custom_call.1} parent=1 // pred_fallthru
      _
    %v44 = vld [vmem:[%s0] sm:$0xf]
    %v45 = vld [vmem:[#allocation2] sm:$0xf]
    %v46 = vld [vmem:[#allocation2 + $0x4] sm:$0xf]
    %v47 = vld [vmem:[#allocation2 + $0x8] sm:$0xf]
    %v48 = vld [vmem:[#allocation2 + $0xc] sm:$0xf]
    %v49 = vld [vmem:[%s2] sm:$0x1]
    %v51 = vperm.slane %v49, 0
    %v57 = vunpack.c.l.b16 %v45
    %v58 = vunpack.c.l.b16 %v46
    %v59 = vunpack.c.l.b16 %v47
    %v60 = vunpack.c.l.b16 %v48
    %v61 = vpack.c.b16 %v58, %v57
    %v62 = vpack.c.b16 %v60, %v59
    %vm65 = vcmask 261120
    %v67 = vsel %vm65, %v44, 0
    %69 = vmatpush.bf16.msra.mxu0 0
    %70 = vmatpush.bf16.msra.mxu0 0
    %71 = vmatpush.bf16.msra.mxu0 0
    %72 = vmatpush.bf16.msra.mxu0 0
    %73 = vmatpush.bf16.msra.mxu0 0
    %74 = vmatpush.bf16.msra.mxu0 0
    %75 = vmatpush.bf16.msra.mxu0 %v62
    %76 = vmatpush.bf16.msra.mxu0 %v61
    %77 = vmatmul.bf16.gmra.mxu0 %v67
    %v78 = vpop.f32.mrf.mxu0
    %v79 = vadd.f32 %v51, %v78
    %v80 = vpop.f32.mrf.mxu0
    %81 = vdwg.mxu0
    %v82 = vmax.f32 %v79, 0.0
    %v83 = vpack.c.bf16 %v82, %v82
    %v84 = vld [vmem:[%s3] sm:$0xf]
    %v85 = vld [vmem:[%s3 + $0x4] sm:$0xf]
    %v86 = vld [vmem:[%s3 + $0x8] sm:$0xf]
    %v87 = vld [vmem:[%s3 + $0xc] sm:$0xf]
    %v88 = vld [vmem:[%s3 + $0x10] sm:$0xf]
    %v89 = vld [vmem:[%s3 + $0x14] sm:$0xf]
    %v90 = vld [vmem:[%s3 + $0x18] sm:$0xf]
    %v91 = vld [vmem:[%s3 + $0x1c] sm:$0xf]
    %v92 = vld [vmem:[%s4] sm:$0x1]
    %v94 = vperm.slane %v92, 0
    %v104 = vunpack.c.l.b16 %v84
    %v105 = vunpack.c.l.b16 %v85
    %v106 = vunpack.c.l.b16 %v86
    %v107 = vunpack.c.l.b16 %v87
    %v108 = vunpack.c.l.b16 %v88
    %v109 = vunpack.c.l.b16 %v89
    %v110 = vunpack.c.l.b16 %v90
    %v111 = vunpack.c.l.b16 %v91
    %v112 = vpack.c.b16 %v105, %v104
    %v113 = vpack.c.b16 %v107, %v106
    %v114 = vpack.c.b16 %v109, %v108
    %v115 = vpack.c.b16 %v111, %v110
    %vm120 = vcmask 523264
    %v122 = vsel %vm120, %v83, 0
    %124 = vmatpush.bf16.msra.mxu0 0
    %125 = vmatpush.bf16.msra.mxu0 0
    %126 = vmatpush.bf16.msra.mxu0 0
    %127 = vmatpush.bf16.msra.mxu0 0
    %128 = vmatpush.bf16.msra.mxu0 %v115
    %129 = vmatpush.bf16.msra.mxu0 %v114
    %130 = vmatpush.bf16.msra.mxu0 %v113
    %131 = vmatpush.bf16.msra.mxu0 %v112
    %132 = vmatmul.bf16.gmra.mxu0 %v122
    %v133 = vpop.f32.mrf.mxu0
    %v134 = vadd.f32 %v94, %v133
    %v135 = vpop.f32.mrf.mxu0
    %136 = vdwg.mxu0
    %v137 = vmax.f32 %v134, 0.0
    %v138 = vpack.c.bf16 %v137, %v137
    %v139 = vld [vmem:[%s5] sm:$0xf]
    %v140 = vld [vmem:[%s5 + $0x4] sm:$0xf]
    %v141 = vld [vmem:[%s5 + $0x8] sm:$0xf]
    %v142 = vld [vmem:[%s5 + $0xc] sm:$0xf]
    %v143 = vld [vmem:[%s5 + $0x10] sm:$0xf]
    %v144 = vld [vmem:[%s5 + $0x14] sm:$0xf]
    %v145 = vld [vmem:[%s5 + $0x18] sm:$0xf]
    %v146 = vld [vmem:[%s5 + $0x1c] sm:$0xf]
    %v147 = vld [vmem:[%s6] sm:$0x1]
    %v149 = vperm.slane %v147, 0
    %v159 = vunpack.c.l.b16 %v139
    %v160 = vunpack.c.l.b16 %v140
    %v161 = vunpack.c.l.b16 %v141
    %v162 = vunpack.c.l.b16 %v142
    %v163 = vunpack.c.l.b16 %v143
    %v164 = vunpack.c.l.b16 %v144
    %v165 = vunpack.c.l.b16 %v145
    %v166 = vunpack.c.l.b16 %v146
    %v167 = vpack.c.b16 %v160, %v159
    %v168 = vpack.c.b16 %v162, %v161
    %v169 = vpack.c.b16 %v164, %v163
    %v170 = vpack.c.b16 %v166, %v165
    %v176 = vsel %vm120, %v138, 0
    %178 = vmatpush.bf16.msra.mxu0 0
    %179 = vmatpush.bf16.msra.mxu0 0
    %180 = vmatpush.bf16.msra.mxu0 0
    %181 = vmatpush.bf16.msra.mxu0 0
    %182 = vmatpush.bf16.msra.mxu0 %v170
    %183 = vmatpush.bf16.msra.mxu0 %v169
    %184 = vmatpush.bf16.msra.mxu0 %v168
    %185 = vmatpush.bf16.msra.mxu0 %v167
    %186 = vmatmul.bf16.gmra.mxu0 %v176
    %v187 = vpop.f32.mrf.mxu0
    %v188 = vadd.f32 %v149, %v187
    %v189 = vpop.f32.mrf.mxu0
    %190 = vdwg.mxu0
    %v191 = vmul.f32 %v188, %v188
    %192 = vxpose.xlu0.b32.start [1/16] %v191, 128
    %193 = vxpose.xlu0.b32.cont [2/16] 0.0, 128
    %194 = vxpose.xlu0.b32.cont [3/16] 0.0, 128
    %195 = vxpose.xlu0.b32.cont [4/16] 0.0, 128
    %196 = vxpose.xlu0.b32.cont [5/16] 0.0, 128
    %197 = vxpose.xlu0.b32.cont [6/16] 0.0, 128
    %198 = vxpose.xlu0.b32.cont [7/16] 0.0, 128
    %199 = vxpose.xlu0.b32.cont [8/16] 0.0, 128
    %200 = vxpose.xlu0.b32.cont [9/16] 0.0, 128
    %201 = vxpose.xlu0.b32.cont [10/16] 0.0, 128
    %202 = vxpose.xlu0.b32.cont [11/16] 0.0, 128
    %203 = vxpose.xlu0.b32.cont [12/16] 0.0, 128
    %204 = vxpose.xlu0.b32.cont [13/16] 0.0, 128
    %205 = vxpose.xlu0.b32.cont [14/16] 0.0, 128
    %206 = vxpose.xlu0.b32.cont [15/16] 0.0, 128
    %207 = vxpose.xlu0.b32.end [16/16] 0.0, 128
    %v208 = vpop.trf.xlu0
    %v209 = vpop.trf.xlu0
    %v210 = vpop.trf.xlu0
    %v211 = vpop.trf.xlu0
    %v212 = vpop.trf.xlu0
    %v213 = vpop.trf.xlu0
    %v214 = vpop.trf.xlu0
    %v215 = vpop.trf.xlu0
    %v216 = vpop.trf.xlu0
    %v217 = vpop.trf.xlu0
    %v218 = vpop.trf.xlu0
    %v219 = vpop.trf.xlu0
    %v220 = vpop.trf.xlu0
    %v221 = vpop.trf.xlu0
    %v222 = vpop.trf.xlu0
    %v223 = vpop.trf.xlu0
    %vm224 = vcmask 64512
    %v225 = vsel %vm224, %v208, 0.0
    %v226 = vsel %vm224, %v209, 0.0
    %v227 = vadd.f32 %v225, %v226
    %v228 = vrot.slane %v227, 4
    %v229 = vadd.f32 %v227, %v228
    %v230 = vrot.slane %v229, 2
    %v231 = vadd.f32 %v229, %v230
    %v232 = vrot.slane %v231, 1
    %v233 = vadd.f32 %v231, %v232
    %v234 = vrsqrt.pop %v233
    %v235 = vmul.f32 %v234, %v233
    %v236 = vmul.f32 %v235, %v234
    %v237 = vmul.f32 0.5, %v236
    %v238 = vsub.f32 1.5, %v237
    %v239 = vmul.f32 %v234, %v238
    %v240 = vmul.f32 %v233, %v239
    %vm241 = vcmp.eq.f32.partialorder %v233, inf
    %v242 = vsel %vm241, %v233, %v240
    %vm243 = vcmp.eq.f32.partialorder %v233, 0.0
    %v244 = vand.u32 %v233, 2147483648
    %v245 = vsel %vm243, %v244, %v242
    %v246 = vsub.f32 0.0, %v245
    %vm247 = vcmask 57344
    %248 = vst.msk [vmem:[#allocation5] sm:$0x1] %vm247, %v246
    // Predicated region
    $region34: #{tpu_custom_call.1} parent=1 // pred_check
      _
    $region35: #{tpu_custom_call.1} parent=1 // pred_check_branch
      %250 = sbr.rel (0) target = $region37
    $region36: #{tpu_custom_call.1} parent=1 // pred_region
      %252 = vsyncadd [#allocation4], 0
      %s254 = sshll.u32 [#allocation5], 4
      %s255 = int_to_ptr.vmem [resolvable:$true] %s254
      %s256 = sshll.u32 %s7, 4
      %s257 = int_to_ptr.hbm [resolvable:$true] %s256
      %259 = dma.vmem_to_hbm [thread:$0]  %s255, 16, %s257, [#allocation4]
    $region37: #{tpu_custom_call.1} parent=1 // pred_fallthru
      _
    // Predicated region
    $region38: #{tpu_custom_call.1} parent=1 // pred_check
      _
    $region39: #{tpu_custom_call.1} parent=1 // pred_check_branch
      %261 = sbr.rel (0) target = $region41
    $region40: #{tpu_custom_call.1} parent=1 // pred_region
      %263 = dma.done [#allocation4], 16
    $region41: #{tpu_custom_call.1} parent=1 // pred_fallthru
      _
    %264 = vsyncpa [#allocation3], 1
    %265 = vsyncpa [#allocation4], 1

</llo_original>
